<compile_context>
chip_gen: v6e
topology: v6e:2x2x1
jax: 0.10.0
libtpu: 0.0.40
codegen_flags: <defaults>
</compile_context>

<pallas_src>
import jax
import jax.numpy as jnp
from jax.experimental import pallas as pl
from jax.experimental.pallas import tpu as pltpu


def _round_up(x, m):
    return ((x + m - 1) // m) * m


def _device_kind():
    try:
        return jax.devices()[0].device_kind.lower()
    except Exception:
        return ""


def _is_v6_or_newer():
    kind = _device_kind()
    return ("v6" in kind) or ("v7" in kind) or ("7x" in kind)


def _act_dtype(compute_dtype):
    # bf16 VPU/EUP exists on v6e/v7x only; v5e (and older) must do bias+SiLU in f32.
    if _is_v6_or_newer() and jnp.dtype(compute_dtype) == jnp.dtype(jnp.bfloat16):
        return jnp.bfloat16
    return jnp.float32


def _pad_dim(d, use_256):
    # 128-lane padding; bump to 256 multiples on v6e/v7x (2x256x256 MXU) for real hiddens.
    return _round_up(d, 256 if (use_256 and d >= 128) else 128)


def _silu(x):
    # sigmoid lowers to EUP exp + reciprocal (separate VLIW slot next to MXU/VPU).
    return x * jax.nn.sigmoid(x)


def quantile_mlp_kernel(x_ref, w1_ref, b1_ref, w2_ref, b2_ref, w3_ref, b3_ref, o_ref):
    compute_dtype = w1_ref.dtype   # bf16 MXU operands
    act_dtype = b1_ref.dtype       # bf16 on v6e/v7x, f32 on v5e

    # Hidden layer 1: Linear + SiLU (+ Dropout == identity at eval).
    x = x_ref[...].astype(compute_dtype)   # in-kernel cast; VPU work co-issues with MXU
    h = jnp.dot(x, w1_ref[...], preferred_element_type=jnp.float32)
    h = _silu(h.astype(act_dtype) + b1_ref[...])

    # Hidden layer 2: Linear + SiLU (+ Dropout == identity at eval).
    h = jnp.dot(h.astype(compute_dtype), w2_ref[...], preferred_element_type=jnp.float32)
    h = _silu(h.astype(act_dtype) + b2_ref[...])

    # Output head: Linear(prev, 9) zero-padded to a narrow block, no activation.
    out = jnp.dot(h.astype(compute_dtype), w3_ref[...], preferred_element_type=jnp.float32)
    o_ref[...] = out + b3_ref[...]   # f32 bias-add, f32 store of the narrow block


def quantile_mlp_forward(x, params, *, compute_dtype=jnp.bfloat16, tm_max=1024,
                         training=False):
    """x: (B, input_size) float32. params: dict of (in,out) weights, (1,out) biases.

    Returns (B, 9) float32 (eval-mode forward; dropout is identity).
    """
    if training:
        # TODO(synk): training-mode dropout (pltpu.prng_seed/prng_random_bits) not implemented.
        raise NotImplementedError("QuantileMLP Pallas kernel implements eval-mode only")

    B, in_features = x.shape
    w1, b1, w2, b2, w3, b3 = (
        params["w1"], params["b1"], params["w2"], params["b2"], params["w3"], params["b3"],
    )
    h1, h2, n_out = w1.shape[1], w2.shape[1], w3.shape[1]

    use_256 = _is_v6_or_newer()
    act_dtype = _act_dtype(compute_dtype)

    # Feature padding: lane-dense hiddens; narrow (full-array-dim) output block.
    h1_p = _pad_dim(h1, use_256)
    h2_p = _pad_dim(h2, use_256)
    out_p = _round_up(n_out, 128) if n_out > 64 else _round_up(n_out, 16)

    # Batch tile: minimize padding, keep a multiple of 8 sublanes, cap at tm_max rows.
    n_tiles = max(1, -(-B // tm_max))
    tm = _round_up(-(-B // n_tiles), 8)
    padded_B = _round_up(B, tm)

    def pad2(a, rows, cols, dtype):
        out = jnp.zeros((rows, cols), dtype)
        return out.at[: a.shape[0], : a.shape[1]].set(a.astype(dtype))

    # x stays f32 and un-padded along features; only pad batch rows when needed.
    if padded_B != B:
        x_p = jnp.zeros((padded_B, in_features), x.dtype).at[:B].set(x)
    else:
        x_p = x

    # Weights in bf16 for the MXU; b1/b2 in the activation dtype; b3 in f32 (f32 head).
    w1_p = pad2(w1, in_features, h1_p, compute_dtype)
    w2_p = pad2(w2, h1_p, h2_p, compute_dtype)
    w3_p = pad2(w3, h2_p, out_p, compute_dtype)
    b1_p = pad2(b1, 1, h1_p, act_dtype)
    b2_p = pad2(b2, 1, h2_p, act_dtype)
    b3_p = pad2(b3, 1, out_p, jnp.float32)

    grid = (padded_B // tm,)

    c_item = jnp.dtype(compute_dtype).itemsize
    a_item = jnp.dtype(act_dtype).itemsize
    x_item = jnp.dtype(x.dtype).itemsize
    mm_macs = in_features * h1_p + h1_p * h2_p + h2_p * out_p
    param_bytes = mm_macs * c_item + (h1_p + h2_p) * a_item + out_p * 4

    cost = pl.CostEstimate(
        flops=2 * padded_B * mm_macs,
        transcendentals=2 * padded_B * (h1_p + h2_p),   # sigmoid ~= exp + reciprocal
        bytes_accessed=padded_B * in_features * x_item + param_bytes + padded_B * out_p * 4,
    )

    # VMEM: double-buffered x/out tiles + resident params + f32 accumulators/activations.
    tile_bytes = 2 * tm * in_features * x_item + 2 * tm * out_p * 4
    interm_bytes = 3 * tm * max(h1_p, h2_p) * 4
    vmem_need = tile_bytes + 2 * param_bytes + interm_bytes
    try:
        vmem_cap = int(pltpu.get_tpu_info().vmem_capacity_bytes)
    except Exception:
        vmem_cap = 64 * 1024 * 1024   # conservative (v7x per-TC physical VMEM)
    vmem_limit = int(min(max(2 * vmem_need, 16 * 1024 * 1024), (vmem_cap * 3) // 4))

    def build_call(weight_pipeline_mode):
        if weight_pipeline_mode is None:
            def wspec(shape):
                return pl.BlockSpec(shape, lambda i: (0, 0))
        else:
            def wspec(shape):
                return pl.BlockSpec(shape, lambda i: (0, 0),
                                    pipeline_mode=weight_pipeline_mode)
        in_specs = [
            pl.BlockSpec((tm, in_features), lambda i: (i, 0)),   # x tile marches over batch
            wspec((in_features, h1_p)),                          # weights/biases VMEM-resident
            wspec((1, h1_p)),
            wspec((h1_p, h2_p)),
            wspec((1, h2_p)),
            wspec((h2_p, out_p)),
            wspec((1, out_p)),
        ]
        out_spec = pl.BlockSpec((tm, out_p), lambda i: (i, 0))
        return pl.pallas_call(
            quantile_mlp_kernel,
            out_shape=jax.ShapeDtypeStruct((padded_B, out_p), jnp.float32),
            grid=grid,
            in_specs=in_specs,
            out_specs=out_spec,
            compiler_params=pltpu.CompilerParams(
                dimension_semantics=("parallel",),   # megacore-shard batch tiles on v7x
                vmem_limit_bytes=vmem_limit,
            ),
            cost_estimate=cost,
        )

    args = (x_p, w1_p, b1_p, w2_p, b2_p, w3_p, b3_p)
    try:
        # Single-buffer the constant-index weight/bias blocks (halves resident-param VMEM).
        out_padded = build_call(pl.Buffered(1))(*args)
    except Exception:
        # Fallback: default double-buffering if this JAX build rejects Buffered(1).
        out_padded = build_call(None)(*args)

    # Strip batch padding and the zero-padded output columns.
    return out_padded[:B, :n_out]


def init_params(key, input_size, layer_sizes, n_out=9):
    """Deterministic synthetic init (PyTorch-style uniform fan-in scaling)."""
    sizes = [input_size] + list(layer_sizes) + [n_out]
    params = {}
    for i in range(len(sizes) - 1):
        fan_in, fan_out = sizes[i], sizes[i + 1]
        key, kw, kb = jax.random.split(key, 3)
        bound = 1.0 / jnp.sqrt(fan_in)
        params[f"w{i+1}"] = jax.random.uniform(
            kw, (fan_in, fan_out), jnp.float32, -bound, bound)
        params[f"b{i+1}"] = jax.random.uniform(
            kb, (1, fan_out), jnp.float32, -bound, bound)
    return params


def reference_forward(x, params, compute_dtype, act_dtype):
    """Pure-JAX reference matching the kernel's numeric path (bf16 MXU, f32 accum,
    bias+SiLU in act_dtype)."""
    def mm(a, w):
        return jnp.dot(a.astype(compute_dtype), w.astype(compute_dtype),
                       preferred_element_type=jnp.float32)

    h = _silu(mm(x, params["w1"]).astype(act_dtype) + params["b1"].astype(act_dtype))
    h = _silu(mm(h, params["w2"]).astype(act_dtype) + params["b2"].astype(act_dtype))
    return mm(h, params["w3"]) + params["b3"]


def reference_forward_f32(x, params):
    """Full-f32 reference (matches the PyTorch module's numerics)."""
    h = _silu(x @ params["w1"] + params["b1"])
    h = _silu(h @ params["w2"] + params["b2"])
    return h @ params["w3"] + params["b3"]


if __name__ == "__main__":
    key = jax.random.PRNGKey(0)
    batch = 8
    input_size = 32
    layer_sizes = [64, 32]
    dropout_rates = [0.1, 0.2]   # identity at inference; listed for spec parity only

    k_x, k_p = jax.random.split(key)
    x = jax.random.normal(k_x, (batch, input_size), jnp.float32)
    params = init_params(k_p, input_size, layer_sizes, n_out=9)

    out = quantile_mlp_forward(x, params)
    out = jax.block_until_ready(out)
    assert out.shape == (batch, 9), out.shape

    # Reference that mirrors the kernel's dtype path (bf16 MXU + bf16/f32 activations).
    act_dtype = _act_dtype(jnp.bfloat16)
    ref = reference_forward(x, params, jnp.bfloat16, act_dtype)
    max_err = float(jnp.max(jnp.abs(out - ref)))
    assert jnp.allclose(out, ref, atol=2e-2, rtol=2e-2), max_err

    # Loose check against the true f32 module forward (bounds the bf16 rounding error).
    ref32 = reference_forward_f32(x, params)
    max_err_f32 = float(jnp.max(jnp.abs(out - ref32)))
    assert max_err_f32 < 0.1, max_err_f32

    print("KERNEL_OK")
</pallas_src>

<mosaic_0001>
module attributes {stable_mosaic.version = 11 : i64} {
  func.func @quantile_mlp_kernel(%arg0: i32, %arg1: memref<8x32xf32, #tpu.memory_space<vmem>>, %arg2: memref<32x128xbf16, #tpu.memory_space<vmem>>, %arg3: memref<1x128xf32, #tpu.memory_space<vmem>>, %arg4: memref<128x128xbf16, #tpu.memory_space<vmem>>, %arg5: memref<1x128xf32, #tpu.memory_space<vmem>>, %arg6: memref<128x16xbf16, #tpu.memory_space<vmem>>, %arg7: memref<1x16xf32, #tpu.memory_space<vmem>>, %arg8: memref<8x16xf32, #tpu.memory_space<vmem>>) attributes {dimension_semantics = [#tpu.dimension_semantics<parallel>], iteration_bounds = array<i64: 1>, scalar_prefetch = 0 : i64, scratch_operands = 0 : i64, tpu.core_type = #tpu.core_type<tc>, window_params = [{transform_indices = @transform_0, window_bounds = array<i64: 8, 32>}, {pipeline_mode = #tpu.pipeline_mode<synchronous>, transform_indices = @transform_1, window_bounds = array<i64: 32, 128>}, {pipeline_mode = #tpu.pipeline_mode<synchronous>, transform_indices = @transform_2, window_bounds = array<i64: 1, 128>}, {pipeline_mode = #tpu.pipeline_mode<synchronous>, transform_indices = @transform_3, window_bounds = array<i64: 128, 128>}, {pipeline_mode = #tpu.pipeline_mode<synchronous>, transform_indices = @transform_4, window_bounds = array<i64: 1, 128>}, {pipeline_mode = #tpu.pipeline_mode<synchronous>, transform_indices = @transform_5, window_bounds = array<i64: 128, 16>}, {pipeline_mode = #tpu.pipeline_mode<synchronous>, transform_indices = @transform_6, window_bounds = array<i64: 1, 16>}, {transform_indices = @transform_7, window_bounds = array<i64: 8, 16>}]} {
    %c0 = arith.constant 0 : index
    %c0_0 = arith.constant 0 : index
    %0 = vector.load %arg1[%c0, %c0_0] : memref<8x32xf32, #tpu.memory_space<vmem>>, vector<8x32xf32>
    %1 = arith.truncf %0 : vector<8x32xf32> to vector<8x32xbf16>
    %c0_1 = arith.constant 0 : index
    %c0_2 = arith.constant 0 : index
    %2 = vector.load %arg2[%c0_1, %c0_2] : memref<32x128xbf16, #tpu.memory_space<vmem>>, vector<32x128xbf16>
    %cst = arith.constant dense<0.000000e+00> : vector<8x128xf32>
    %3 = tpu.matmul %1, %2, %cst {dimension_numbers = #tpu.dot_dimension_numbers<[1], [0], [0], [1], [0, 0, 1, 1], [], []>} : vector<8x32xbf16>, vector<32x128xbf16>, vector<8x128xf32> -> vector<8x128xf32>
    %c0_3 = arith.constant 0 : index
    %c0_4 = arith.constant 0 : index
    %4 = vector.load %arg3[%c0_3, %c0_4] : memref<1x128xf32, #tpu.memory_space<vmem>>, vector<1x128xf32>
    %5 = vector.broadcast %4 : vector<1x128xf32> to vector<8x128xf32>
    %6 = arith.addf %3, %5 : vector<8x128xf32>
    %7 = arith.negf %6 : vector<8x128xf32>
    %8 = math.exp %7 : vector<8x128xf32>
    %cst_5 = arith.constant 1.000000e+00 : f32
    %9 = vector.broadcast %cst_5 : f32 to vector<8x128xf32>
    %10 = arith.addf %9, %8 : vector<8x128xf32>
    %11 = arith.divf %9, %10 : vector<8x128xf32>
    %12 = arith.mulf %6, %11 : vector<8x128xf32>
    %13 = arith.truncf %12 : vector<8x128xf32> to vector<8x128xbf16>
    %c0_6 = arith.constant 0 : index
    %c0_7 = arith.constant 0 : index
    %14 = vector.load %arg4[%c0_6, %c0_7] : memref<128x128xbf16, #tpu.memory_space<vmem>>, vector<128x128xbf16>
    %cst_8 = arith.constant dense<0.000000e+00> : vector<8x128xf32>
    %15 = tpu.matmul %13, %14, %cst_8 {dimension_numbers = #tpu.dot_dimension_numbers<[1], [0], [0], [1], [0, 0, 1, 1], [], []>} : vector<8x128xbf16>, vector<128x128xbf16>, vector<8x128xf32> -> vector<8x128xf32>
    %c0_9 = arith.constant 0 : index
    %c0_10 = arith.constant 0 : index
    %16 = vector.load %arg5[%c0_9, %c0_10] : memref<1x128xf32, #tpu.memory_space<vmem>>, vector<1x128xf32>
    %17 = vector.broadcast %16 : vector<1x128xf32> to vector<8x128xf32>
    %18 = arith.addf %15, %17 : vector<8x128xf32>
    %19 = arith.negf %18 : vector<8x128xf32>
    %20 = math.exp %19 : vector<8x128xf32>
    %cst_11 = arith.constant 1.000000e+00 : f32
    %21 = vector.broadcast %cst_11 : f32 to vector<8x128xf32>
    %22 = arith.addf %21, %20 : vector<8x128xf32>
    %23 = arith.divf %21, %22 : vector<8x128xf32>
    %24 = arith.mulf %18, %23 : vector<8x128xf32>
    %25 = arith.truncf %24 : vector<8x128xf32> to vector<8x128xbf16>
    %c0_12 = arith.constant 0 : index
    %c0_13 = arith.constant 0 : index
    %26 = vector.load %arg6[%c0_12, %c0_13] : memref<128x16xbf16, #tpu.memory_space<vmem>>, vector<128x16xbf16>
    %cst_14 = arith.constant dense<0.000000e+00> : vector<8x16xf32>
    %27 = tpu.matmul %25, %26, %cst_14 {dimension_numbers = #tpu.dot_dimension_numbers<[1], [0], [0], [1], [0, 0, 1, 1], [], []>} : vector<8x128xbf16>, vector<128x16xbf16>, vector<8x16xf32> -> vector<8x16xf32>
    %c0_15 = arith.constant 0 : index
    %c0_16 = arith.constant 0 : index
    %28 = vector.load %arg7[%c0_15, %c0_16] : memref<1x16xf32, #tpu.memory_space<vmem>>, vector<1x16xf32>
    %29 = vector.broadcast %28 : vector<1x16xf32> to vector<8x16xf32>
    %30 = arith.addf %27, %29 : vector<8x16xf32>
    %c0_17 = arith.constant 0 : index
    %c0_18 = arith.constant 0 : index
    %31 = vector.load %arg8[%c0_17, %c0_18] : memref<8x16xf32, #tpu.memory_space<vmem>>, vector<8x16xf32>
    tpu.vector_store %arg8[%c0_17, %c0_18], %30 {strides = array<i32>} : memref<8x16xf32, #tpu.memory_space<vmem>>, vector<8x16xf32>,
    return
  }
  func.func @transform_0(%arg0: i32) -> (i32, i32) {
    %c0_i32 = arith.constant 0 : i32
    %c0_i32_0 = arith.constant 0 : i32
    return %arg0, %c0_i32 : i32, i32
  }
  func.func @transform_1(%arg0: i32) -> (i32, i32) {
    %c0_i32 = arith.constant 0 : i32
    %c0_i32_0 = arith.constant 0 : i32
    %c0_i32_1 = arith.constant 0 : i32
    return %c0_i32, %c0_i32_0 : i32, i32
  }
  func.func @transform_2(%arg0: i32) -> (i32, i32) {
    %c0_i32 = arith.constant 0 : i32
    %c0_i32_0 = arith.constant 0 : i32
    %c0_i32_1 = arith.constant 0 : i32
    return %c0_i32, %c0_i32_0 : i32, i32
  }
  func.func @transform_3(%arg0: i32) -> (i32, i32) {
    %c0_i32 = arith.constant 0 : i32
    %c0_i32_0 = arith.constant 0 : i32
    %c0_i32_1 = arith.constant 0 : i32
    return %c0_i32, %c0_i32_0 : i32, i32
  }
  func.func @transform_4(%arg0: i32) -> (i32, i32) {
    %c0_i32 = arith.constant 0 : i32
    %c0_i32_0 = arith.constant 0 : i32
    %c0_i32_1 = arith.constant 0 : i32
    return %c0_i32, %c0_i32_0 : i32, i32
  }
  func.func @transform_5(%arg0: i32) -> (i32, i32) {
    %c0_i32 = arith.constant 0 : i32
    %c0_i32_0 = arith.constant 0 : i32
    %c0_i32_1 = arith.constant 0 : i32
    return %c0_i32, %c0_i32_0 : i32, i32
  }
  func.func @transform_6(%arg0: i32) -> (i32, i32) {
    %c0_i32 = arith.constant 0 : i32
    %c0_i32_0 = arith.constant 0 : i32
    %c0_i32_1 = arith.constant 0 : i32
    return %c0_i32, %c0_i32_0 : i32, i32
  }
  func.func @transform_7(%arg0: i32) -> (i32, i32) {
    %c0_i32 = arith.constant 0 : i32
    %c0_i32_0 = arith.constant 0 : i32
    return %arg0, %c0_i32 : i32, i32
  }
}

module attributes {stable_mosaic.version = 11 : i64} {
  func.func @quantile_mlp_kernel(%arg0: i32, %arg1: memref<8x32xf32, #tpu.memory_space<vmem>>, %arg2: memref<32x128xbf16, #tpu.memory_space<vmem>>, %arg3: memref<1x128xf32, #tpu.memory_space<vmem>>, %arg4: memref<128x128xbf16, #tpu.memory_space<vmem>>, %arg5: memref<1x128xf32, #tpu.memory_space<vmem>>, %arg6: memref<128x16xbf16, #tpu.memory_space<vmem>>, %arg7: memref<1x16xf32, #tpu.memory_space<vmem>>, %arg8: memref<8x16xf32, #tpu.memory_space<vmem>>) attributes {dimension_semantics = [#tpu.dimension_semantics<parallel>], iteration_bounds = array<i64: 1>, scalar_prefetch = 0 : i64, scratch_operands = 0 : i64, tpu.core_type = #tpu.core_type<tc>, window_params = [{transform_indices = @transform_0, window_bounds = array<i64: 8, 32>}, {pipeline_mode = #tpu.pipeline_mode<synchronous>, transform_indices = @transform_1, window_bounds = array<i64: 32, 128>}, {pipeline_mode = #tpu.pipeline_mode<synchronous>, transform_indices = @transform_2, window_bounds = array<i64: 1, 128>}, {pipeline_mode = #tpu.pipeline_mode<synchronous>, transform_indices = @transform_3, window_bounds = array<i64: 128, 128>}, {pipeline_mode = #tpu.pipeline_mode<synchronous>, transform_indices = @transform_4, window_bounds = array<i64: 1, 128>}, {pipeline_mode = #tpu.pipeline_mode<synchronous>, transform_indices = @transform_5, window_bounds = array<i64: 128, 16>}, {pipeline_mode = #tpu.pipeline_mode<synchronous>, transform_indices = @transform_6, window_bounds = array<i64: 1, 16>}, {transform_indices = @transform_7, window_bounds = array<i64: 8, 16>}]} {
    %c0 = arith.constant 0 : index
    %c0_0 = arith.constant 0 : index
    %0 = vector.load %arg1[%c0, %c0_0] : memref<8x32xf32, #tpu.memory_space<vmem>>, vector<8x32xf32>
    %1 = arith.truncf %0 : vector<8x32xf32> to vector<8x32xbf16>
    %c0_1 = arith.constant 0 : index
    %c0_2 = arith.constant 0 : index
    %2 = vector.load %arg2[%c0_1, %c0_2] : memref<32x128xbf16, #tpu.memory_space<vmem>>, vector<32x128xbf16>
    %cst = arith.constant dense<0.000000e+00> : vector<8x128xf32>
    %3 = tpu.matmul %1, %2, %cst {dimension_numbers = #tpu.dot_dimension_numbers<[1], [0], [0], [1], [0, 0, 1, 1], [], []>} : vector<8x32xbf16>, vector<32x128xbf16>, vector<8x128xf32> -> vector<8x128xf32>
    %c0_3 = arith.constant 0 : index
    %c0_4 = arith.constant 0 : index
    %4 = vector.load %arg3[%c0_3, %c0_4] : memref<1x128xf32, #tpu.memory_space<vmem>>, vector<1x128xf32>
    %5 = vector.broadcast %4 : vector<1x128xf32> to vector<8x128xf32>
    %6 = arith.addf %3, %5 : vector<8x128xf32>
    %7 = arith.negf %6 : vector<8x128xf32>
    %8 = math.exp %7 : vector<8x128xf32>
    %cst_5 = arith.constant 1.000000e+00 : f32
    %9 = vector.broadcast %cst_5 : f32 to vector<8x128xf32>
    %10 = arith.addf %9, %8 : vector<8x128xf32>
    %11 = arith.divf %9, %10 : vector<8x128xf32>
    %12 = arith.mulf %6, %11 : vector<8x128xf32>
    %13 = arith.truncf %12 : vector<8x128xf32> to vector<8x128xbf16>
    %c0_6 = arith.constant 0 : index
    %c0_7 = arith.constant 0 : index
    %14 = vector.load %arg4[%c0_6, %c0_7] : memref<128x128xbf16, #tpu.memory_space<vmem>>, vector<128x128xbf16>
    %cst_8 = arith.constant dense<0.000000e+00> : vector<8x128xf32>
    %15 = tpu.matmul %13, %14, %cst_8 {dimension_numbers = #tpu.dot_dimension_numbers<[1], [0], [0], [1], [0, 0, 1, 1], [], []>} : vector<8x128xbf16>, vector<128x128xbf16>, vector<8x128xf32> -> vector<8x128xf32>
    %c0_9 = arith.constant 0 : index
    %c0_10 = arith.constant 0 : index
    %16 = vector.load %arg5[%c0_9, %c0_10] : memref<1x128xf32, #tpu.memory_space<vmem>>, vector<1x128xf32>
    %17 = vector.broadcast %16 : vector<1x128xf32> to vector<8x128xf32>
    %18 = arith.addf %15, %17 : vector<8x128xf32>
    %19 = arith.negf %18 : vector<8x128xf32>
    %20 = math.exp %19 : vector<8x128xf32>
    %cst_11 = arith.constant 1.000000e+00 : f32
    %21 = vector.broadcast %cst_11 : f32 to vector<8x128xf32>
    %22 = arith.addf %21, %20 : vector<8x128xf32>
    %23 = arith.divf %21, %22 : vector<8x128xf32>
    %24 = arith.mulf %18, %23 : vector<8x128xf32>
    %25 = arith.truncf %24 : vector<8x128xf32> to vector<8x128xbf16>
    %c0_12 = arith.constant 0 : index
    %c0_13 = arith.constant 0 : index
    %26 = vector.load %arg6[%c0_12, %c0_13] : memref<128x16xbf16, #tpu.memory_space<vmem>>, vector<128x16xbf16>
    %cst_14 = arith.constant dense<0.000000e+00> : vector<8x16xf32>
    %27 = tpu.matmul %25, %26, %cst_14 {dimension_numbers = #tpu.dot_dimension_numbers<[1], [0], [0], [1], [0, 0, 1, 1], [], []>} : vector<8x128xbf16>, vector<128x16xbf16>, vector<8x16xf32> -> vector<8x16xf32>
    %c0_15 = arith.constant 0 : index
    %c0_16 = arith.constant 0 : index
    %28 = vector.load %arg7[%c0_15, %c0_16] : memref<1x16xf32, #tpu.memory_space<vmem>>, vector<1x16xf32>
    %29 = vector.broadcast %28 : vector<1x16xf32> to vector<8x16xf32>
    %30 = arith.addf %27, %29 : vector<8x16xf32>
    %c0_17 = arith.constant 0 : index
    %c0_18 = arith.constant 0 : index
    %31 = vector.load %arg8[%c0_17, %c0_18] : memref<8x16xf32, #tpu.memory_space<vmem>>, vector<8x16xf32>
    tpu.vector_store %arg8[%c0_17, %c0_18], %30 {strides = array<i32>} : memref<8x16xf32, #tpu.memory_space<vmem>>, vector<8x16xf32>,
    return
  }
  func.func @transform_0(%arg0: i32) -> (i32, i32) {
    %c0_i32 = arith.constant 0 : i32
    %c0_i32_0 = arith.constant 0 : i32
    return %arg0, %c0_i32 : i32, i32
  }
  func.func @transform_1(%arg0: i32) -> (i32, i32) {
    %c0_i32 = arith.constant 0 : i32
    %c0_i32_0 = arith.constant 0 : i32
    %c0_i32_1 = arith.constant 0 : i32
    return %c0_i32, %c0_i32_0 : i32, i32
  }
  func.func @transform_2(%arg0: i32) -> (i32, i32) {
    %c0_i32 = arith.constant 0 : i32
    %c0_i32_0 = arith.constant 0 : i32
    %c0_i32_1 = arith.constant 0 : i32
    return %c0_i32, %c0_i32_0 : i32, i32
  }
  func.func @transform_3(%arg0: i32) -> (i32, i32) {
    %c0_i32 = arith.constant 0 : i32
    %c0_i32_0 = arith.constant 0 : i32
    %c0_i32_1 = arith.constant 0 : i32
    return %c0_i32, %c0_i32_0 : i32, i32
  }
  func.func @transform_4(%arg0: i32) -> (i32, i32) {
    %c0_i32 = arith.constant 0 : i32
    %c0_i32_0 = arith.constant 0 : i32
    %c0_i32_1 = arith.constant 0 : i32
    return %c0_i32, %c0_i32_0 : i32, i32
  }
  func.func @transform_5(%arg0: i32) -> (i32, i32) {
    %c0_i32 = arith.constant 0 : i32
    %c0_i32_0 = arith.constant 0 : i32
    %c0_i32_1 = arith.constant 0 : i32
    return %c0_i32, %c0_i32_0 : i32, i32
  }
  func.func @transform_6(%arg0: i32) -> (i32, i32) {
    %c0_i32 = arith.constant 0 : i32
    %c0_i32_0 = arith.constant 0 : i32
    %c0_i32_1 = arith.constant 0 : i32
    return %c0_i32, %c0_i32_0 : i32, i32
  }
  func.func @transform_7(%arg0: i32) -> (i32, i32) {
    %c0_i32 = arith.constant 0 : i32
    %c0_i32_0 = arith.constant 0 : i32
    return %arg0, %c0_i32 : i32, i32
  }
}

</mosaic_0001>

<llo_original>
// kernel: tpu_custom_call.1
$region0: #{tpu_custom_call.1}
  #allocation0 [shape = 'u32[]', space=smem, size = 0x4, offset = 0x4, fixed_abs, tag = 'smem constant byte address 0x4 - core index']
  #allocation1 [shape = 'u32[144,128]{1,0:T(1,128)}', space=vmem, size = 0x12000, scoped, tag = 'internal scratch']
  %s0 = inlined_call_operand.vmem [shape: f32[8,32], index: 0, kind: input, shape index: {}]
  %s1 = inlined_call_operand.hbm [shape: bf16[32,128], index: 1, kind: input, shape index: {}]
  %s2 = inlined_call_operand.vmem [shape: f32[1,128], index: 2, kind: input, shape index: {}]
  %s3 = inlined_call_operand.vmem [shape: bf16[128,128], index: 3, kind: input, shape index: {}]
  %s4 = inlined_call_operand.hbm [shape: f32[1,128], index: 4, kind: input, shape index: {}]
  %s5 = inlined_call_operand.vmem [shape: bf16[128,16], index: 5, kind: input, shape index: {}]
  %s6 = inlined_call_operand.vmem [shape: f32[1,16], index: 6, kind: input, shape index: {}]
  %s7 = inlined_call_operand.hbm [shape: f32[8,16], index: 7, kind: output, shape index: {}]
  %s8 = sld [smem:[#allocation0]]
  $region46: #{tpu_custom_call.1} parent=0
    _
  %s10 = ssub.s32 1, %s8
  %s11 = scalar_select 0, %s10, %s8
  $region1: #{tpu_custom_call.1} parent=0
    #allocation2 [shape = 'u8[8192]{0}', space=vmem, size = 0x2000, scoped, tag = 'input window, operand 1, single buffered']
    #allocation3 [shape = 's32[1]{0}', space=sflag, size = 0x4, scoped, tag = 'scoped memory for tpu_custom_call.1']
    #allocation4 [shape = 's32[1]{0}', space=sflag, size = 0x4, scoped, tag = 'scoped memory for tpu_custom_call.1']
    #allocation5 [shape = 'u8[512]{0}', space=vmem, size = 0x400, scoped, tag = 'input window, operand 4, single buffered']
    #allocation6 [shape = 's32[1]{0}', space=sflag, size = 0x4, scoped, tag = 'scoped memory for tpu_custom_call.1']
    #allocation7 [shape = 'u8[4096]{0}', space=vmem, size = 0x1000, scoped, tag = 'output window, operand 0, single buffered']
    %12 = vsyncpa [#allocation3], 0
    %13 = vsyncpa [#allocation6], 0
    %14 = vsyncpa [#allocation4], 0
    // Predicated region
    $region2: #{tpu_custom_call.1} parent=1 // pred_check
      _
    $region3: #{tpu_custom_call.1} parent=1 // pred_check_branch
      %16 = sbr.rel (0) target = $region5
    $region4: #{tpu_custom_call.1} parent=1 // pred_region
      _
    $region5: #{tpu_custom_call.1} parent=1 // pred_fallthru
      _
    // Predicated region
    $region6: #{tpu_custom_call.1} parent=1 // pred_check
      _
    $region7: #{tpu_custom_call.1} parent=1 // pred_check_branch
      %18 = sbr.rel (0) target = $region9
    $region8: #{tpu_custom_call.1} parent=1 // pred_region
      %s20 = ssub.s32 256, 256
      %21 = vsyncadd [#allocation3], %s20
      %s22 = sshll.u32 [#allocation2], 4
      %s23 = int_to_ptr.vmem [resolvable:$true] %s22
      %28 = dma.hbm_to_vmem [thread:$0]  %s1, 256, %s23, [#allocation3], 64, 64, 4
    $region9: #{tpu_custom_call.1} parent=1 // pred_fallthru
      _
    // Predicated region
    $region10: #{tpu_custom_call.1} parent=1 // pred_check
      _
    $region11: #{tpu_custom_call.1} parent=1 // pred_check_branch
      %30 = sbr.rel (0) target = $region13
    $region12: #{tpu_custom_call.1} parent=1 // pred_region
      _
    $region13: #{tpu_custom_call.1} parent=1 // pred_fallthru
      _
    // Predicated region
    $region14: #{tpu_custom_call.1} parent=1 // pred_check
      _
    $region15: #{tpu_custom_call.1} parent=1 // pred_check_branch
      %32 = sbr.rel (0) target = $region17
    $region16: #{tpu_custom_call.1} parent=1 // pred_region
      _
    $region17: #{tpu_custom_call.1} parent=1 // pred_fallthru
      _
    // Predicated region
    $region18: #{tpu_custom_call.1} parent=1 // pred_check
      _
    $region19: #{tpu_custom_call.1} parent=1 // pred_check_branch
      %34 = sbr.rel (0) target = $region21
    $region20: #{tpu_custom_call.1} parent=1 // pred_region
      %s36 = ssub.s32 16, 16
      %37 = vsyncadd [#allocation6], %s36
      %s39 = sshll.u32 [#allocation5], 4
      %s40 = int_to_ptr.vmem [resolvable:$true] %s39
      %42 = dma.hbm_to_vmem [thread:$0]  %s4, 16, %s40, [#allocation6]
    $region21: #{tpu_custom_call.1} parent=1 // pred_fallthru
      _
    // Predicated region
    $region22: #{tpu_custom_call.1} parent=1 // pred_check
      _
    $region23: #{tpu_custom_call.1} parent=1 // pred_check_branch
      %44 = sbr.rel (0) target = $region25
    $region24: #{tpu_custom_call.1} parent=1 // pred_region
      _
    $region25: #{tpu_custom_call.1} parent=1 // pred_fallthru
      _
    // Predicated region
    $region26: #{tpu_custom_call.1} parent=1 // pred_check
      _
    $region27: #{tpu_custom_call.1} parent=1 // pred_check_branch
      %46 = sbr.rel (0) target = $region29
    $region28: #{tpu_custom_call.1} parent=1 // pred_region
      _
    $region29: #{tpu_custom_call.1} parent=1 // pred_fallthru
      _
    // Predicated region
    $region30: #{tpu_custom_call.1} parent=1 // pred_check
      _
    $region31: #{tpu_custom_call.1} parent=1 // pred_check_branch
      %48 = sbr.rel (0) target = $region33
    $region32: #{tpu_custom_call.1} parent=1 // pred_region
      %49 = dma.done [#allocation3], 256
    $region33: #{tpu_custom_call.1} parent=1 // pred_fallthru
      _
    // Predicated region
    $region34: #{tpu_custom_call.1} parent=1 // pred_check
      _
    $region35: #{tpu_custom_call.1} parent=1 // pred_check_branch
      %51 = sbr.rel (0) target = $region37
    $region36: #{tpu_custom_call.1} parent=1 // pred_region
      %52 = dma.done [#allocation6], 16
    $region37: #{tpu_custom_call.1} parent=1 // pred_fallthru
      _
    %v54 = vld [vmem:[%s0] sm:$0xff]
    %v55 = vpack.c.bf16 %v54, %v54
    %v56 = vld [vmem:[#allocation2] sm:$0xf]
    %v57 = vld [vmem:[#allocation2 + $0x4] sm:$0xf]
    %v58 = vld [vmem:[#allocation2 + $0x8] sm:$0xf]
    %v59 = vld [vmem:[#allocation2 + $0xc] sm:$0xf]
    %v60 = vld [vmem:[%s2] sm:$0x1]
    %v62 = vlaneseq
    %v63 = vshrl.u32 %v62, 7
    %v64 = vsub.s32 0, %v63
    %v65 = vrot.slane %v60, %v64
    %v71 = vunpack.c.l.b16 %v56
    %v72 = vunpack.c.l.b16 %v57
    %v73 = vunpack.c.l.b16 %v58
    %v74 = vunpack.c.l.b16 %v59
    %v75 = vpack.c.b16 %v72, %v71
    %v76 = vpack.c.b16 %v74, %v73
    %vm79 = vcmask 261120
    %v81 = vsel %vm79, %v55, 0
    %83 = vmatprep.subr.bf16.mxu0 0
    %84 = vmatpush1.bf16.msra.mxu0 0
    %85 = vmatprep.subr.bf16.mxu0 0
    %86 = vmatpush1.bf16.msra.mxu0 0
    %87 = vmatprep.subr.bf16.mxu0 0
    %88 = vmatpush1.bf16.msra.mxu0 0
    %89 = vmatprep.subr.bf16.mxu0 0
    %90 = vmatpush1.bf16.msra.mxu0 0
    %91 = vmatprep.subr.bf16.mxu0 0
    %92 = vmatpush1.bf16.msra.mxu0 0
    %93 = vmatprep.subr.bf16.mxu0 0
    %94 = vmatpush1.bf16.msra.mxu0 0
    %95 = vmatprep.subr.bf16.mxu0 0
    %96 = vmatpush1.bf16.msra.mxu0 %v76
    %97 = vmatprep.subr.bf16.mxu0 0
    %98 = vmatpush1.bf16.msra.mxu0 %v75
    %99 = vmatprep.subr.bf16.mxu0 0
    %100 = vmatpush2.bf16.msra.mxu0 0
    %101 = vmatprep.subr.bf16.mxu0 0
    %102 = vmatpush2.bf16.msra.mxu0 0
    %103 = vmatprep.subr.bf16.mxu0 0
    %104 = vmatpush2.bf16.msra.mxu0 0
    %105 = vmatprep.subr.bf16.mxu0 0
    %106 = vmatpush2.bf16.msra.mxu0 0
    %107 = vmatprep.subr.bf16.mxu0 0
    %108 = vmatpush2.bf16.msra.mxu0 0
    %109 = vmatprep.subr.bf16.mxu0 0
    %110 = vmatpush2.bf16.msra.mxu0 0
    %111 = vmatprep.subr.bf16.mxu0 0
    %112 = vmatpush2.bf16.msra.mxu0 0
    %113 = vmatprep.subr.bf16.mxu0 0
    %114 = vmatpush2.bf16.msra.mxu0 0
    %115 = vmatprep.mubr.bf16.mxu0 0
    %116 = vmatmul.mubr.bf16.gmra.mxu0 %v81
    %v117 = vpop.f32.mrf.mxu0
    %v118 = vadd.f32 %v65, %v117
    %v119 = vpop.f32.mrf.mxu0
    %v120 = vpop.f32.mrf.mxu0
    %v121 = vpop.f32.mrf.mxu0
    %122 = vdwg.mxu0
    %v123 = vxor.u32 %v118, 2147483648
    %v124 = vmul.f32 %v123, 1.442695
    %v125 = vpow.pop %v124
    %v126 = vadd.f32 %v125, 1.0
    %v127 = vrcp.pop %v126
    %v128 = vmul.f32 1.0, %v127
    %v129 = vmul.f32 %v118, %v128
    %v130 = vpack.c.bf16 %v129, %v129
    %v131 = vld [vmem:[%s3] sm:$0xf]
    %v132 = vld [vmem:[%s3 + $0x4] sm:$0xf]
    %v133 = vld [vmem:[%s3 + $0x8] sm:$0xf]
    %v134 = vld [vmem:[%s3 + $0xc] sm:$0xf]
    %v135 = vld [vmem:[%s3 + $0x10] sm:$0xf]
    %v136 = vld [vmem:[%s3 + $0x14] sm:$0xf]
    %v137 = vld [vmem:[%s3 + $0x18] sm:$0xf]
    %v138 = vld [vmem:[%s3 + $0x1c] sm:$0xf]
    %v139 = vld [vmem:[%s3 + $0x20] sm:$0xf]
    %v140 = vld [vmem:[%s3 + $0x24] sm:$0xf]
    %v141 = vld [vmem:[%s3 + $0x28] sm:$0xf]
    %v142 = vld [vmem:[%s3 + $0x2c] sm:$0xf]
    %v143 = vld [vmem:[%s3 + $0x30] sm:$0xf]
    %v144 = vld [vmem:[%s3 + $0x34] sm:$0xf]
    %v145 = vld [vmem:[%s3 + $0x38] sm:$0xf]
    %v146 = vld [vmem:[%s3 + $0x3c] sm:$0xf]
    %v147 = vld [vmem:[#allocation5] sm:$0x1]
    %v149 = vlaneseq
    %v150 = vshrl.u32 %v149, 7
    %v151 = vsub.s32 0, %v150
    %v152 = vrot.slane %v147, %v151
    %v170 = vunpack.c.l.b16 %v131
    %v171 = vunpack.c.l.b16 %v132
    %v172 = vunpack.c.l.b16 %v133
    %v173 = vunpack.c.l.b16 %v134
    %v174 = vunpack.c.l.b16 %v135
    %v175 = vunpack.c.l.b16 %v136
    %v176 = vunpack.c.l.b16 %v137
    %v177 = vunpack.c.l.b16 %v138
    %v178 = vunpack.c.l.b16 %v139
    %v179 = vunpack.c.l.b16 %v140
    %v180 = vunpack.c.l.b16 %v141
    %v181 = vunpack.c.l.b16 %v142
    %v182 = vunpack.c.l.b16 %v143
    %v183 = vunpack.c.l.b16 %v144
    %v184 = vunpack.c.l.b16 %v145
    %v185 = vunpack.c.l.b16 %v146
    %v186 = vpack.c.b16 %v171, %v170
    %v187 = vpack.c.b16 %v173, %v172
    %v188 = vpack.c.b16 %v175, %v174
    %v189 = vpack.c.b16 %v177, %v176
    %v190 = vpack.c.b16 %v179, %v178
    %v191 = vpack.c.b16 %v181, %v180
    %v192 = vpack.c.b16 %v183, %v182
    %v193 = vpack.c.b16 %v185, %v184
    %202 = vmatprep.subr.bf16.mxu0 0
    %203 = vmatpush1.bf16.msra.mxu0 %v193
    %204 = vmatprep.subr.bf16.mxu0 0
    %205 = vmatpush1.bf16.msra.mxu0 %v192
    %206 = vmatprep.subr.bf16.mxu0 0
    %207 = vmatpush1.bf16.msra.mxu0 %v191
    %208 = vmatprep.subr.bf16.mxu0 0
    %209 = vmatpush1.bf16.msra.mxu0 %v190
    %210 = vmatprep.subr.bf16.mxu0 0
    %211 = vmatpush1.bf16.msra.mxu0 %v189
    %212 = vmatprep.subr.bf16.mxu0 0
    %213 = vmatpush1.bf16.msra.mxu0 %v188
    %214 = vmatprep.subr.bf16.mxu0 0
    %215 = vmatpush1.bf16.msra.mxu0 %v187
    %216 = vmatprep.subr.bf16.mxu0 0
    %217 = vmatpush1.bf16.msra.mxu0 %v186
    %218 = vmatprep.subr.bf16.mxu0 0
    %219 = vmatpush2.bf16.msra.mxu0 0
    %220 = vmatprep.subr.bf16.mxu0 0
    %221 = vmatpush2.bf16.msra.mxu0 0
    %222 = vmatprep.subr.bf16.mxu0 0
    %223 = vmatpush2.bf16.msra.mxu0 0
    %224 = vmatprep.subr.bf16.mxu0 0
    %225 = vmatpush2.bf16.msra.mxu0 0
    %226 = vmatprep.subr.bf16.mxu0 0
    %227 = vmatpush2.bf16.msra.mxu0 0
    %228 = vmatprep.subr.bf16.mxu0 0
    %229 = vmatpush2.bf16.msra.mxu0 0
    %230 = vmatprep.subr.bf16.mxu0 0
    %231 = vmatpush2.bf16.msra.mxu0 0
    %232 = vmatprep.subr.bf16.mxu0 0
    %233 = vmatpush2.bf16.msra.mxu0 0
    %234 = vmatprep.mubr.bf16.mxu0 0
    %235 = vmatmul.mubr.bf16.gmra.mxu0 %v130
    %v236 = vpop.f32.mrf.mxu0
    %v237 = vadd.f32 %v152, %v236
    %v238 = vpop.f32.mrf.mxu0
    %v239 = vpop.f32.mrf.mxu0
    %v240 = vpop.f32.mrf.mxu0
    %241 = vdwg.mxu0
    %v242 = vxor.u32 %v237, 2147483648
    %v243 = vmul.f32 %v242, 1.442695
    %v244 = vpow.pop %v243
    %v245 = vadd.f32 %v244, 1.0
    %v246 = vrcp.pop %v245
    %v247 = vmul.f32 1.0, %v246
    %v248 = vmul.f32 %v237, %v247
    %v249 = vpack.c.bf16 %v248, %v248
    %v250 = vld [vmem:[%s5] sm:$0xf]
    %v251 = vld [vmem:[%s5 + $0x4] sm:$0xf]
    %v252 = vld [vmem:[%s5 + $0x8] sm:$0xf]
    %v253 = vld [vmem:[%s5 + $0xc] sm:$0xf]
    %v254 = vld [vmem:[%s5 + $0x10] sm:$0xf]
    %v255 = vld [vmem:[%s5 + $0x14] sm:$0xf]
    %v256 = vld [vmem:[%s5 + $0x18] sm:$0xf]
    %v257 = vld [vmem:[%s5 + $0x1c] sm:$0xf]
    %v258 = vld [vmem:[%s5 + $0x20] sm:$0xf]
    %v259 = vld [vmem:[%s5 + $0x24] sm:$0xf]
    %v260 = vld [vmem:[%s5 + $0x28] sm:$0xf]
    %v261 = vld [vmem:[%s5 + $0x2c] sm:$0xf]
    %v262 = vld [vmem:[%s5 + $0x30] sm:$0xf]
    %v263 = vld [vmem:[%s5 + $0x34] sm:$0xf]
    %v264 = vld [vmem:[%s5 + $0x38] sm:$0xf]
    %v265 = vld [vmem:[%s5 + $0x3c] sm:$0xf]
    %v266 = vld [vmem:[%s6] sm:$0x1]
    %v268 = vlaneseq
    %v269 = vshrl.u32 %v268, 7
    %v270 = vsub.s32 0, %v269
    %v271 = vrot.slane %v266, %v270
    %v289 = vunpack.c.l.b16 %v250
    %v290 = vunpack.c.l.b16 %v251
    %v291 = vunpack.c.l.b16 %v252
    %v292 = vunpack.c.l.b16 %v253
    %v293 = vunpack.c.l.b16 %v254
    %v294 = vunpack.c.l.b16 %v255
    %v295 = vunpack.c.l.b16 %v256
    %v296 = vunpack.c.l.b16 %v257
    %v297 = vunpack.c.l.b16 %v258
    %v298 = vunpack.c.l.b16 %v259
    %v299 = vunpack.c.l.b16 %v260
    %v300 = vunpack.c.l.b16 %v261
    %v301 = vunpack.c.l.b16 %v262
    %v302 = vunpack.c.l.b16 %v263
    %v303 = vunpack.c.l.b16 %v264
    %v304 = vunpack.c.l.b16 %v265
    %v305 = vpack.c.b16 %v290, %v289
    %v306 = vpack.c.b16 %v292, %v291
    %v307 = vpack.c.b16 %v294, %v293
    %v308 = vpack.c.b16 %v296, %v295
    %v309 = vpack.c.b16 %v298, %v297
    %v310 = vpack.c.b16 %v300, %v299
    %v311 = vpack.c.b16 %v302, %v301
    %v312 = vpack.c.b16 %v304, %v303
    %321 = vmatprep.subr.bf16.mxu0 0
    %322 = vmatpush1.bf16.msra.mxu0 %v312
    %323 = vmatprep.subr.bf16.mxu0 0
    %324 = vmatpush1.bf16.msra.mxu0 %v311
    %325 = vmatprep.subr.bf16.mxu0 0
    %326 = vmatpush1.bf16.msra.mxu0 %v310
    %327 = vmatprep.subr.bf16.mxu0 0
    %328 = vmatpush1.bf16.msra.mxu0 %v309
    %329 = vmatprep.subr.bf16.mxu0 0
    %330 = vmatpush1.bf16.msra.mxu0 %v308
    %331 = vmatprep.subr.bf16.mxu0 0
    %332 = vmatpush1.bf16.msra.mxu0 %v307
    %333 = vmatprep.subr.bf16.mxu0 0
    %334 = vmatpush1.bf16.msra.mxu0 %v306
    %335 = vmatprep.subr.bf16.mxu0 0
    %336 = vmatpush1.bf16.msra.mxu0 %v305
    %337 = vmatprep.subr.bf16.mxu0 0
    %338 = vmatpush2.bf16.msra.mxu0 0
    %339 = vmatprep.subr.bf16.mxu0 0
    %340 = vmatpush2.bf16.msra.mxu0 0
    %341 = vmatprep.subr.bf16.mxu0 0
    %342 = vmatpush2.bf16.msra.mxu0 0
    %343 = vmatprep.subr.bf16.mxu0 0
    %344 = vmatpush2.bf16.msra.mxu0 0
    %345 = vmatprep.subr.bf16.mxu0 0
    %346 = vmatpush2.bf16.msra.mxu0 0
    %347 = vmatprep.subr.bf16.mxu0 0
    %348 = vmatpush2.bf16.msra.mxu0 0
    %349 = vmatprep.subr.bf16.mxu0 0
    %350 = vmatpush2.bf16.msra.mxu0 0
    %351 = vmatprep.subr.bf16.mxu0 0
    %352 = vmatpush2.bf16.msra.mxu0 0
    %353 = vmatprep.mubr.bf16.mxu0 0
    %354 = vmatmul.mubr.bf16.gmra.mxu0 %v249
    %v355 = vpop.f32.mrf.mxu0
    %v356 = vadd.f32 %v271, %v355
    %v357 = vpop.f32.mrf.mxu0
    %v358 = vpop.f32.mrf.mxu0
    %v359 = vpop.f32.mrf.mxu0
    %360 = vdwg.mxu0
    %vm361 = vcmask 130048
    %362 = vst.msk [vmem:[#allocation7] sm:$0xff] %vm361, %v356
    // Predicated region
    $region38: #{tpu_custom_call.1} parent=1 // pred_check
      _
    $region39: #{tpu_custom_call.1} parent=1 // pred_check_branch
      %364 = sbr.rel (0) target = $region41
    $region40: #{tpu_custom_call.1} parent=1 // pred_region
      %s366 = ssub.s32 128, 128
      %367 = vsyncadd [#allocation4], %s366
      %s369 = sshll.u32 [#allocation7], 4
      %s370 = int_to_ptr.vmem [resolvable:$true] %s369
      %372 = dma.vmem_to_hbm [thread:$0]  %s370, 128, %s7, [#allocation4]
    $region41: #{tpu_custom_call.1} parent=1 // pred_fallthru
      _
    // Predicated region
    $region42: #{tpu_custom_call.1} parent=1 // pred_check
      _
    $region43: #{tpu_custom_call.1} parent=1 // pred_check_branch
      %374 = sbr.rel (0) target = $region45
    $region44: #{tpu_custom_call.1} parent=1 // pred_region
      %375 = dma.done [#allocation4], 128
    $region45: #{tpu_custom_call.1} parent=1 // pred_fallthru
      _
    %376 = vsyncpa [#allocation3], 1
    %377 = vsyncpa [#allocation6], 1
    %378 = vsyncpa [#allocation4], 1

// kernel: tpu_custom_call.1
$region0: #{tpu_custom_call.1}
  #allocation0 [shape = 'u32[]', space=smem, size = 0x4, offset = 0x4, fixed_abs, tag = 'smem constant byte address 0x4 - core index']
  #allocation1 [shape = 'u32[144,128]{1,0:T(1,128)}', space=vmem, size = 0x12000, scoped, tag = 'internal scratch']
  %s0 = inlined_call_operand.vmem [shape: f32[8,32], index: 0, kind: input, shape index: {}]
  %s1 = inlined_call_operand.hbm [shape: bf16[32,128], index: 1, kind: input, shape index: {}]
  %s2 = inlined_call_operand.vmem [shape: f32[1,128], index: 2, kind: input, shape index: {}]
  %s3 = inlined_call_operand.vmem [shape: bf16[128,128], index: 3, kind: input, shape index: {}]
  %s4 = inlined_call_operand.hbm [shape: f32[1,128], index: 4, kind: input, shape index: {}]
  %s5 = inlined_call_operand.vmem [shape: bf16[128,16], index: 5, kind: input, shape index: {}]
  %s6 = inlined_call_operand.vmem [shape: f32[1,16], index: 6, kind: input, shape index: {}]
  %s7 = inlined_call_operand.hbm [shape: f32[8,16], index: 7, kind: output, shape index: {}]
  %s8 = sld [smem:[#allocation0]]
  $region46: #{tpu_custom_call.1} parent=0
    _
  %s10 = ssub.s32 1, %s8
  %s11 = scalar_select 0, %s10, %s8
  $region1: #{tpu_custom_call.1} parent=0
    #allocation2 [shape = 'u8[8192]{0}', space=vmem, size = 0x2000, scoped, tag = 'input window, operand 1, single buffered']
    #allocation3 [shape = 's32[1]{0}', space=sflag, size = 0x4, scoped, tag = 'scoped memory for tpu_custom_call.1']
    #allocation4 [shape = 's32[1]{0}', space=sflag, size = 0x4, scoped, tag = 'scoped memory for tpu_custom_call.1']
    #allocation5 [shape = 'u8[512]{0}', space=vmem, size = 0x400, scoped, tag = 'input window, operand 4, single buffered']
    #allocation6 [shape = 's32[1]{0}', space=sflag, size = 0x4, scoped, tag = 'scoped memory for tpu_custom_call.1']
    #allocation7 [shape = 'u8[4096]{0}', space=vmem, size = 0x1000, scoped, tag = 'output window, operand 0, single buffered']
    %12 = vsyncpa [#allocation3], 0
    %13 = vsyncpa [#allocation6], 0
    %14 = vsyncpa [#allocation4], 0
    // Predicated region
    $region2: #{tpu_custom_call.1} parent=1 // pred_check
      _
    $region3: #{tpu_custom_call.1} parent=1 // pred_check_branch
      %16 = sbr.rel (0) target = $region5
    $region4: #{tpu_custom_call.1} parent=1 // pred_region
      _
    $region5: #{tpu_custom_call.1} parent=1 // pred_fallthru
      _
    // Predicated region
    $region6: #{tpu_custom_call.1} parent=1 // pred_check
      _
    $region7: #{tpu_custom_call.1} parent=1 // pred_check_branch
      %18 = sbr.rel (0) target = $region9
    $region8: #{tpu_custom_call.1} parent=1 // pred_region
      %s20 = ssub.s32 256, 256
      %21 = vsyncadd [#allocation3], %s20
      %s22 = sshll.u32 [#allocation2], 4
      %s23 = int_to_ptr.vmem [resolvable:$true] %s22
      %28 = dma.hbm_to_vmem [thread:$0]  %s1, 256, %s23, [#allocation3], 64, 64, 4
    $region9: #{tpu_custom_call.1} parent=1 // pred_fallthru
      _
    // Predicated region
    $region10: #{tpu_custom_call.1} parent=1 // pred_check
      _
    $region11: #{tpu_custom_call.1} parent=1 // pred_check_branch
      %30 = sbr.rel (0) target = $region13
    $region12: #{tpu_custom_call.1} parent=1 // pred_region
      _
    $region13: #{tpu_custom_call.1} parent=1 // pred_fallthru
      _
    // Predicated region
    $region14: #{tpu_custom_call.1} parent=1 // pred_check
      _
    $region15: #{tpu_custom_call.1} parent=1 // pred_check_branch
      %32 = sbr.rel (0) target = $region17
    $region16: #{tpu_custom_call.1} parent=1 // pred_region
      _
    $region17: #{tpu_custom_call.1} parent=1 // pred_fallthru
      _
    // Predicated region
    $region18: #{tpu_custom_call.1} parent=1 // pred_check
      _
    $region19: #{tpu_custom_call.1} parent=1 // pred_check_branch
      %34 = sbr.rel (0) target = $region21
    $region20: #{tpu_custom_call.1} parent=1 // pred_region
      %s36 = ssub.s32 16, 16
      %37 = vsyncadd [#allocation6], %s36
      %s39 = sshll.u32 [#allocation5], 4
      %s40 = int_to_ptr.vmem [resolvable:$true] %s39
      %42 = dma.hbm_to_vmem [thread:$0]  %s4, 16, %s40, [#allocation6]
    $region21: #{tpu_custom_call.1} parent=1 // pred_fallthru
      _
    // Predicated region
    $region22: #{tpu_custom_call.1} parent=1 // pred_check
      _
    $region23: #{tpu_custom_call.1} parent=1 // pred_check_branch
      %44 = sbr.rel (0) target = $region25
    $region24: #{tpu_custom_call.1} parent=1 // pred_region
      _
    $region25: #{tpu_custom_call.1} parent=1 // pred_fallthru
      _
    // Predicated region
    $region26: #{tpu_custom_call.1} parent=1 // pred_check
      _
    $region27: #{tpu_custom_call.1} parent=1 // pred_check_branch
      %46 = sbr.rel (0) target = $region29
    $region28: #{tpu_custom_call.1} parent=1 // pred_region
      _
    $region29: #{tpu_custom_call.1} parent=1 // pred_fallthru
      _
    // Predicated region
    $region30: #{tpu_custom_call.1} parent=1 // pred_check
      _
    $region31: #{tpu_custom_call.1} parent=1 // pred_check_branch
      %48 = sbr.rel (0) target = $region33
    $region32: #{tpu_custom_call.1} parent=1 // pred_region
      %49 = dma.done [#allocation3], 256
    $region33: #{tpu_custom_call.1} parent=1 // pred_fallthru
      _
    // Predicated region
    $region34: #{tpu_custom_call.1} parent=1 // pred_check
      _
    $region35: #{tpu_custom_call.1} parent=1 // pred_check_branch
      %51 = sbr.rel (0) target = $region37
    $region36: #{tpu_custom_call.1} parent=1 // pred_region
      %52 = dma.done [#allocation6], 16
    $region37: #{tpu_custom_call.1} parent=1 // pred_fallthru
      _
    %v54 = vld [vmem:[%s0] sm:$0xff]
    %v55 = vpack.c.bf16 %v54, %v54
    %v56 = vld [vmem:[#allocation2] sm:$0xf]
    %v57 = vld [vmem:[#allocation2 + $0x4] sm:$0xf]
    %v58 = vld [vmem:[#allocation2 + $0x8] sm:$0xf]
    %v59 = vld [vmem:[#allocation2 + $0xc] sm:$0xf]
    %v60 = vld [vmem:[%s2] sm:$0x1]
    %v62 = vlaneseq
    %v63 = vshrl.u32 %v62, 7
    %v64 = vsub.s32 0, %v63
    %v65 = vrot.slane %v60, %v64
    %v71 = vunpack.c.l.b16 %v56
    %v72 = vunpack.c.l.b16 %v57
    %v73 = vunpack.c.l.b16 %v58
    %v74 = vunpack.c.l.b16 %v59
    %v75 = vpack.c.b16 %v72, %v71
    %v76 = vpack.c.b16 %v74, %v73
    %vm79 = vcmask 261120
    %v81 = vsel %vm79, %v55, 0
    %83 = vmatprep.subr.bf16.mxu0 0
    %84 = vmatpush1.bf16.msra.mxu0 0
    %85 = vmatprep.subr.bf16.mxu0 0
    %86 = vmatpush1.bf16.msra.mxu0 0
    %87 = vmatprep.subr.bf16.mxu0 0
    %88 = vmatpush1.bf16.msra.mxu0 0
    %89 = vmatprep.subr.bf16.mxu0 0
    %90 = vmatpush1.bf16.msra.mxu0 0
    %91 = vmatprep.subr.bf16.mxu0 0
    %92 = vmatpush1.bf16.msra.mxu0 0
    %93 = vmatprep.subr.bf16.mxu0 0
    %94 = vmatpush1.bf16.msra.mxu0 0
    %95 = vmatprep.subr.bf16.mxu0 0
    %96 = vmatpush1.bf16.msra.mxu0 %v76
    %97 = vmatprep.subr.bf16.mxu0 0
    %98 = vmatpush1.bf16.msra.mxu0 %v75
    %99 = vmatprep.subr.bf16.mxu0 0
    %100 = vmatpush2.bf16.msra.mxu0 0
    %101 = vmatprep.subr.bf16.mxu0 0
    %102 = vmatpush2.bf16.msra.mxu0 0
    %103 = vmatprep.subr.bf16.mxu0 0
    %104 = vmatpush2.bf16.msra.mxu0 0
    %105 = vmatprep.subr.bf16.mxu0 0
    %106 = vmatpush2.bf16.msra.mxu0 0
    %107 = vmatprep.subr.bf16.mxu0 0
    %108 = vmatpush2.bf16.msra.mxu0 0
    %109 = vmatprep.subr.bf16.mxu0 0
    %110 = vmatpush2.bf16.msra.mxu0 0
    %111 = vmatprep.subr.bf16.mxu0 0
    %112 = vmatpush2.bf16.msra.mxu0 0
    %113 = vmatprep.subr.bf16.mxu0 0
    %114 = vmatpush2.bf16.msra.mxu0 0
    %115 = vmatprep.mubr.bf16.mxu0 0
    %116 = vmatmul.mubr.bf16.gmra.mxu0 %v81
    %v117 = vpop.f32.mrf.mxu0
    %v118 = vadd.f32 %v65, %v117
    %v119 = vpop.f32.mrf.mxu0
    %v120 = vpop.f32.mrf.mxu0
    %v121 = vpop.f32.mrf.mxu0
    %122 = vdwg.mxu0
    %v123 = vxor.u32 %v118, 2147483648
    %v124 = vmul.f32 %v123, 1.442695
    %v125 = vpow.pop %v124
    %v126 = vadd.f32 %v125, 1.0
    %v127 = vrcp.pop %v126
    %v128 = vmul.f32 1.0, %v127
    %v129 = vmul.f32 %v118, %v128
    %v130 = vpack.c.bf16 %v129, %v129
    %v131 = vld [vmem:[%s3] sm:$0xf]
    %v132 = vld [vmem:[%s3 + $0x4] sm:$0xf]
    %v133 = vld [vmem:[%s3 + $0x8] sm:$0xf]
    %v134 = vld [vmem:[%s3 + $0xc] sm:$0xf]
    %v135 = vld [vmem:[%s3 + $0x10] sm:$0xf]
    %v136 = vld [vmem:[%s3 + $0x14] sm:$0xf]
    %v137 = vld [vmem:[%s3 + $0x18] sm:$0xf]
    %v138 = vld [vmem:[%s3 + $0x1c] sm:$0xf]
    %v139 = vld [vmem:[%s3 + $0x20] sm:$0xf]
    %v140 = vld [vmem:[%s3 + $0x24] sm:$0xf]
    %v141 = vld [vmem:[%s3 + $0x28] sm:$0xf]
    %v142 = vld [vmem:[%s3 + $0x2c] sm:$0xf]
    %v143 = vld [vmem:[%s3 + $0x30] sm:$0xf]
    %v144 = vld [vmem:[%s3 + $0x34] sm:$0xf]
    %v145 = vld [vmem:[%s3 + $0x38] sm:$0xf]
    %v146 = vld [vmem:[%s3 + $0x3c] sm:$0xf]
    %v147 = vld [vmem:[#allocation5] sm:$0x1]
    %v149 = vlaneseq
    %v150 = vshrl.u32 %v149, 7
    %v151 = vsub.s32 0, %v150
    %v152 = vrot.slane %v147, %v151
    %v170 = vunpack.c.l.b16 %v131
    %v171 = vunpack.c.l.b16 %v132
    %v172 = vunpack.c.l.b16 %v133
    %v173 = vunpack.c.l.b16 %v134
    %v174 = vunpack.c.l.b16 %v135
    %v175 = vunpack.c.l.b16 %v136
    %v176 = vunpack.c.l.b16 %v137
    %v177 = vunpack.c.l.b16 %v138
    %v178 = vunpack.c.l.b16 %v139
    %v179 = vunpack.c.l.b16 %v140
    %v180 = vunpack.c.l.b16 %v141
    %v181 = vunpack.c.l.b16 %v142
    %v182 = vunpack.c.l.b16 %v143
    %v183 = vunpack.c.l.b16 %v144
    %v184 = vunpack.c.l.b16 %v145
    %v185 = vunpack.c.l.b16 %v146
    %v186 = vpack.c.b16 %v171, %v170
    %v187 = vpack.c.b16 %v173, %v172
    %v188 = vpack.c.b16 %v175, %v174
    %v189 = vpack.c.b16 %v177, %v176
    %v190 = vpack.c.b16 %v179, %v178
    %v191 = vpack.c.b16 %v181, %v180
    %v192 = vpack.c.b16 %v183, %v182
    %v193 = vpack.c.b16 %v185, %v184
    %202 = vmatprep.subr.bf16.mxu0 0
    %203 = vmatpush1.bf16.msra.mxu0 %v193
    %204 = vmatprep.subr.bf16.mxu0 0
    %205 = vmatpush1.bf16.msra.mxu0 %v192
    %206 = vmatprep.subr.bf16.mxu0 0
    %207 = vmatpush1.bf16.msra.mxu0 %v191
    %208 = vmatprep.subr.bf16.mxu0 0
    %209 = vmatpush1.bf16.msra.mxu0 %v190
    %210 = vmatprep.subr.bf16.mxu0 0
    %211 = vmatpush1.bf16.msra.mxu0 %v189
    %212 = vmatprep.subr.bf16.mxu0 0
    %213 = vmatpush1.bf16.msra.mxu0 %v188
    %214 = vmatprep.subr.bf16.mxu0 0
    %215 = vmatpush1.bf16.msra.mxu0 %v187
    %216 = vmatprep.subr.bf16.mxu0 0
    %217 = vmatpush1.bf16.msra.mxu0 %v186
    %218 = vmatprep.subr.bf16.mxu0 0
    %219 = vmatpush2.bf16.msra.mxu0 0
    %220 = vmatprep.subr.bf16.mxu0 0
    %221 = vmatpush2.bf16.msra.mxu0 0
    %222 = vmatprep.subr.bf16.mxu0 0
    %223 = vmatpush2.bf16.msra.mxu0 0
    %224 = vmatprep.subr.bf16.mxu0 0
    %225 = vmatpush2.bf16.msra.mxu0 0
    %226 = vmatprep.subr.bf16.mxu0 0
    %227 = vmatpush2.bf16.msra.mxu0 0
    %228 = vmatprep.subr.bf16.mxu0 0
    %229 = vmatpush2.bf16.msra.mxu0 0
    %230 = vmatprep.subr.bf16.mxu0 0
    %231 = vmatpush2.bf16.msra.mxu0 0
    %232 = vmatprep.subr.bf16.mxu0 0
    %233 = vmatpush2.bf16.msra.mxu0 0
    %234 = vmatprep.mubr.bf16.mxu0 0
    %235 = vmatmul.mubr.bf16.gmra.mxu0 %v130
    %v236 = vpop.f32.mrf.mxu0
    %v237 = vadd.f32 %v152, %v236
    %v238 = vpop.f32.mrf.mxu0
    %v239 = vpop.f32.mrf.mxu0
    %v240 = vpop.f32.mrf.mxu0
    %241 = vdwg.mxu0
    %v242 = vxor.u32 %v237, 2147483648
    %v243 = vmul.f32 %v242, 1.442695
    %v244 = vpow.pop %v243
    %v245 = vadd.f32 %v244, 1.0
    %v246 = vrcp.pop %v245
    %v247 = vmul.f32 1.0, %v246
    %v248 = vmul.f32 %v237, %v247
    %v249 = vpack.c.bf16 %v248, %v248
    %v250 = vld [vmem:[%s5] sm:$0xf]
    %v251 = vld [vmem:[%s5 + $0x4] sm:$0xf]
    %v252 = vld [vmem:[%s5 + $0x8] sm:$0xf]
    %v253 = vld [vmem:[%s5 + $0xc] sm:$0xf]
    %v254 = vld [vmem:[%s5 + $0x10] sm:$0xf]
    %v255 = vld [vmem:[%s5 + $0x14] sm:$0xf]
    %v256 = vld [vmem:[%s5 + $0x18] sm:$0xf]
    %v257 = vld [vmem:[%s5 + $0x1c] sm:$0xf]
    %v258 = vld [vmem:[%s5 + $0x20] sm:$0xf]
    %v259 = vld [vmem:[%s5 + $0x24] sm:$0xf]
    %v260 = vld [vmem:[%s5 + $0x28] sm:$0xf]
    %v261 = vld [vmem:[%s5 + $0x2c] sm:$0xf]
    %v262 = vld [vmem:[%s5 + $0x30] sm:$0xf]
    %v263 = vld [vmem:[%s5 + $0x34] sm:$0xf]
    %v264 = vld [vmem:[%s5 + $0x38] sm:$0xf]
    %v265 = vld [vmem:[%s5 + $0x3c] sm:$0xf]
    %v266 = vld [vmem:[%s6] sm:$0x1]
    %v268 = vlaneseq
    %v269 = vshrl.u32 %v268, 7
    %v270 = vsub.s32 0, %v269
    %v271 = vrot.slane %v266, %v270
    %v289 = vunpack.c.l.b16 %v250
    %v290 = vunpack.c.l.b16 %v251
    %v291 = vunpack.c.l.b16 %v252
    %v292 = vunpack.c.l.b16 %v253
    %v293 = vunpack.c.l.b16 %v254
    %v294 = vunpack.c.l.b16 %v255
    %v295 = vunpack.c.l.b16 %v256
    %v296 = vunpack.c.l.b16 %v257
    %v297 = vunpack.c.l.b16 %v258
    %v298 = vunpack.c.l.b16 %v259
    %v299 = vunpack.c.l.b16 %v260
    %v300 = vunpack.c.l.b16 %v261
    %v301 = vunpack.c.l.b16 %v262
    %v302 = vunpack.c.l.b16 %v263
    %v303 = vunpack.c.l.b16 %v264
    %v304 = vunpack.c.l.b16 %v265
    %v305 = vpack.c.b16 %v290, %v289
    %v306 = vpack.c.b16 %v292, %v291
    %v307 = vpack.c.b16 %v294, %v293
    %v308 = vpack.c.b16 %v296, %v295
    %v309 = vpack.c.b16 %v298, %v297
    %v310 = vpack.c.b16 %v300, %v299
    %v311 = vpack.c.b16 %v302, %v301
    %v312 = vpack.c.b16 %v304, %v303
    %321 = vmatprep.subr.bf16.mxu0 0
    %322 = vmatpush1.bf16.msra.mxu0 %v312
    %323 = vmatprep.subr.bf16.mxu0 0
    %324 = vmatpush1.bf16.msra.mxu0 %v311
    %325 = vmatprep.subr.bf16.mxu0 0
    %326 = vmatpush1.bf16.msra.mxu0 %v310
    %327 = vmatprep.subr.bf16.mxu0 0
    %328 = vmatpush1.bf16.msra.mxu0 %v309
    %329 = vmatprep.subr.bf16.mxu0 0
    %330 = vmatpush1.bf16.msra.mxu0 %v308
    %331 = vmatprep.subr.bf16.mxu0 0
    %332 = vmatpush1.bf16.msra.mxu0 %v307
    %333 = vmatprep.subr.bf16.mxu0 0
    %334 = vmatpush1.bf16.msra.mxu0 %v306
    %335 = vmatprep.subr.bf16.mxu0 0
    %336 = vmatpush1.bf16.msra.mxu0 %v305
    %337 = vmatprep.subr.bf16.mxu0 0
    %338 = vmatpush2.bf16.msra.mxu0 0
    %339 = vmatprep.subr.bf16.mxu0 0
    %340 = vmatpush2.bf16.msra.mxu0 0
    %341 = vmatprep.subr.bf16.mxu0 0
    %342 = vmatpush2.bf16.msra.mxu0 0
    %343 = vmatprep.subr.bf16.mxu0 0
    %344 = vmatpush2.bf16.msra.mxu0 0
    %345 = vmatprep.subr.bf16.mxu0 0
    %346 = vmatpush2.bf16.msra.mxu0 0
    %347 = vmatprep.subr.bf16.mxu0 0
    %348 = vmatpush2.bf16.msra.mxu0 0
    %349 = vmatprep.subr.bf16.mxu0 0
    %350 = vmatpush2.bf16.msra.mxu0 0
    %351 = vmatprep.subr.bf16.mxu0 0
    %352 = vmatpush2.bf16.msra.mxu0 0
    %353 = vmatprep.mubr.bf16.mxu0 0
    %354 = vmatmul.mubr.bf16.gmra.mxu0 %v249
    %v355 = vpop.f32.mrf.mxu0
    %v356 = vadd.f32 %v271, %v355
    %v357 = vpop.f32.mrf.mxu0
    %v358 = vpop.f32.mrf.mxu0
    %v359 = vpop.f32.mrf.mxu0
    %360 = vdwg.mxu0
    %vm361 = vcmask 130048
    %362 = vst.msk [vmem:[#allocation7] sm:$0xff] %vm361, %v356
    // Predicated region
    $region38: #{tpu_custom_call.1} parent=1 // pred_check
      _
    $region39: #{tpu_custom_call.1} parent=1 // pred_check_branch
      %364 = sbr.rel (0) target = $region41
    $region40: #{tpu_custom_call.1} parent=1 // pred_region
      %s366 = ssub.s32 128, 128
      %367 = vsyncadd [#allocation4], %s366
      %s369 = sshll.u32 [#allocation7], 4
      %s370 = int_to_ptr.vmem [resolvable:$true] %s369
      %372 = dma.vmem_to_hbm [thread:$0]  %s370, 128, %s7, [#allocation4]
    $region41: #{tpu_custom_call.1} parent=1 // pred_fallthru
      _
    // Predicated region
    $region42: #{tpu_custom_call.1} parent=1 // pred_check
      _
    $region43: #{tpu_custom_call.1} parent=1 // pred_check_branch
      %374 = sbr.rel (0) target = $region45
    $region44: #{tpu_custom_call.1} parent=1 // pred_region
      %375 = dma.done [#allocation4], 128
    $region45: #{tpu_custom_call.1} parent=1 // pred_fallthru
      _
    %376 = vsyncpa [#allocation3], 1
    %377 = vsyncpa [#allocation6], 1
    %378 = vsyncpa [#allocation4], 1

</llo_original>
